<compile_context>
chip_gen: v6e
topology: v6e:2x2x1
jax: 0.10.0
libtpu: 0.0.40
codegen_flags: <defaults>
</compile_context>

<pallas_src>
import numpy as np
import jax
import jax.numpy as jnp
from jax.experimental import pallas as pl
from jax.experimental.pallas import tpu as pltpu

# GELU tanh-approx constants exactly as written in the PyTorch forward (K*A pre-folded)
_GELU_K = 0.7978845608028654
_GELU_A = 0.044715
_GELU_KA = _GELU_K * _GELU_A


def _build_selection_matrix(H_in, W_in, H_out, W_out):
    """One-hot matrix S of shape (H_out*W_out, H_in*W_in).

    Fused-output position (ho, wo) reads t1-output position (ho+1, wo+1)
    (t2's pad=1 interior crop; dilation is a no-op for 1x1 kernels).
    With t1 stride=(1,2), pad=(0,1):
      wo even -> that t1 column was produced by input column wo//2 + 1  (one-hot row)
      wo odd  -> bias-only position                                     (all-zero row)
    An all-zero row of S makes that output position gelu(b1) @ w2 + b2 for free.
    """
    HWo, HW = H_out * W_out, H_in * W_in
    S = np.zeros((HWo, HW), dtype=np.float32)
    for ho in range(H_out):
        for wo in range(W_out):
            if wo % 2 == 0:
                src = (ho + 1) * W_in + (wo // 2 + 1)
                S[ho * W_out + wo, src] = 1.0
    return S


def _fused_kernel(x_ref, m1_ref, b1_ref, m2_ref, b2_ref, o_ref):
    """Whole forward as two MXU matmuls + elementwise tanh-GELU, one dense store."""
    x = x_ref[...]                                                       # (TB, Cin*HW)
    # t1 (scatter + 1x1 conv-transpose) folded into one matmul
    y = jnp.dot(x, m1_ref[...], preferred_element_type=jnp.float32) + b1_ref[...]  # (TB, HWo*C1)
    # tanh-GELU with pre-folded constants: 0.5*v*(tanh(K*v + (K*A)*v^3) + 1)
    t = jnp.tanh(y * _GELU_K + (y * y * y) * _GELU_KA)
    g = 0.5 * y * (t + 1.0)
    # t2 (interior crop + 1x1 conv-transpose) folded into one block-diagonal matmul;
    # column ordering is C2-major so the wrapper's output reshape to NCHW is free.
    o_ref[...] = jnp.dot(g, m2_ref[...], preferred_element_type=jnp.float32) + b2_ref[...]


def model_forward(x, w1, b1, w2, b2):
    """x: (N, Cin, H, W) NCHW float32.  Returns (N, C2, H-2, 2*W-5) NCHW float32."""
    N, Cin, H, W = x.shape
    C1 = w1.shape[1]
    C2 = w2.shape[1]
    W1o = (W - 1) * 2 - 2 + 1            # t1 output width   (= 7 for W=5)
    H_out, W_out = H - 2, W1o - 2        # t2 output spatial (= 3, 5)
    HW, HWo = H * W, H_out * W_out

    # ---- trace-time folding of both convolutions into dense matrices --------------
    S = jnp.asarray(_build_selection_matrix(H, W, H_out, W_out))            # (HWo, HW)
    # M1[c*HW + p_in, p_out*C1 + c1] = S[p_out, p_in] * w1[c, c1]
    M1 = jnp.einsum('op,cd->cpod', S, w1.astype(jnp.float32)).reshape(Cin * HW, HWo * C1)
    bias1 = jnp.tile(b1.astype(jnp.float32), HWo).reshape(1, HWo * C1)
    # M2[p_src*C1 + c1, c2*HWo + p_dst] = w2[c1, c2] * (p_src == p_dst)   (C2-major cols)
    M2 = jnp.einsum('pq,cd->pcdq', jnp.eye(HWo, dtype=jnp.float32),
                    w2.astype(jnp.float32)).reshape(HWo * C1, C2 * HWo)
    bias2 = jnp.repeat(b2.astype(jnp.float32), HWo).reshape(1, C2 * HWo)

    # NCHW -> (N, Cin*HW): contiguous reshape, free (no transpose)
    x_flat = x.reshape(N, Cin * HW)

    # ---- grid: one step by default; only split the batch for large, 16-divisible N
    # (v7x megacore); per-step overhead otherwise dominates this tiny body.
    if N >= 1024 and N % 16 == 0:
        steps, semantics = 2, ("parallel",)
    else:
        steps, semantics = 1, ("arbitrary",)
    TB = N // steps

    out_flat = pl.pallas_call(
        _fused_kernel,
        out_shape=jax.ShapeDtypeStruct((N, C2 * HWo), jnp.float32),
        grid=(steps,),
        in_specs=[
            pl.BlockSpec((TB, Cin * HW), lambda i: (i, 0)),
            pl.BlockSpec((Cin * HW, HWo * C1), lambda i: (0, 0)),
            pl.BlockSpec((1, HWo * C1), lambda i: (0, 0)),
            pl.BlockSpec((HWo * C1, C2 * HWo), lambda i: (0, 0)),
            pl.BlockSpec((1, C2 * HWo), lambda i: (0, 0)),
        ],
        out_specs=pl.BlockSpec((TB, C2 * HWo), lambda i: (i, 0)),
        compiler_params=pltpu.CompilerParams(dimension_semantics=semantics),
    )(x_flat, M1, bias1, M2, bias2)

    # (N, C2*HWo) with C2-major columns -> NCHW, free reshape
    return out_flat.reshape(N, C2, H_out, W_out)


def ref_forward(x, w1, b1, w2, b2):
    """Pure-JAX reference mirroring the PyTorch semantics (for correctness check)."""
    N, Cin, H, W = x.shape
    C1 = w1.shape[1]
    W1o = (W - 1) * 2 - 2 + 1
    y = jnp.einsum('nchw,cd->ndhw', x, w1)
    v1 = jnp.broadcast_to(b1.reshape(1, C1, 1, 1), (N, C1, H, W1o)) + 0.0
    for w_in in range(W):
        w_out = 2 * w_in - 1
        if 0 <= w_out < W1o:
            v1 = v1.at[:, :, :, w_out].add(y[:, :, :, w_in])
    v9 = 0.5 * v1 * (jnp.tanh(_GELU_K * (v1 + _GELU_A * v1 ** 3)) + 1.0)
    crop = v9[:, :, 1:-1, 1:-1]
    return jnp.einsum('nchw,cd->ndhw', crop, w2) + b2.reshape(1, -1, 1, 1)


if __name__ == "__main__":
    key = jax.random.PRNGKey(0)
    k1, k2, k3, k4, k5 = jax.random.split(key, 5)
    # shapes implied by the module (x1 = randn(_, 3, 5, 5)); small batch of 2
    N, Cin, H, W = 2, 3, 5, 5
    C1, C2 = 5, 8

    x = jax.random.normal(k1, (N, Cin, H, W), dtype=jnp.float32)
    # ConvTranspose2d weights are (in, out, kH, kW); kernels are 1x1 -> stored as (in, out)
    w1 = jax.random.normal(k2, (Cin, C1), dtype=jnp.float32) * 0.5
    b1 = jax.random.normal(k3, (C1,), dtype=jnp.float32) * 0.1
    w2 = jax.random.normal(k4, (C1, C2), dtype=jnp.float32) * 0.5
    b2 = jax.random.normal(k5, (C2,), dtype=jnp.float32) * 0.1

    out = model_forward(x, w1, b1, w2, b2)
    jax.block_until_ready(out)

    ref = ref_forward(x, w1, b1, w2, b2)
    np.testing.assert_allclose(np.asarray(out), np.asarray(ref), rtol=1e-5, atol=1e-5)
    print("KERNEL_OK")
</pallas_src>

<mosaic_0001>
module attributes {stable_mosaic.version = 11 : i64} {
  func.func @_fused_kernel(%arg0: i32, %arg1: memref<2x75xf32, #tpu.memory_space<vmem>>, %arg2: memref<75x75xf32, #tpu.memory_space<vmem>>, %arg3: memref<1x75xf32, #tpu.memory_space<vmem>>, %arg4: memref<75x120xf32, #tpu.memory_space<vmem>>, %arg5: memref<1x120xf32, #tpu.memory_space<vmem>>, %arg6: memref<2x120xf32, #tpu.memory_space<vmem>>) attributes {dimension_semantics = [#tpu.dimension_semantics<arbitrary>], iteration_bounds = array<i64: 1>, scalar_prefetch = 0 : i64, scratch_operands = 0 : i64, tpu.core_type = #tpu.core_type<tc>, window_params = [{transform_indices = @transform_0, window_bounds = array<i64: 2, 75>}, {pipeline_mode = #tpu.pipeline_mode<synchronous>, transform_indices = @transform_1, window_bounds = array<i64: 75, 75>}, {pipeline_mode = #tpu.pipeline_mode<synchronous>, transform_indices = @transform_2, window_bounds = array<i64: 1, 75>}, {pipeline_mode = #tpu.pipeline_mode<synchronous>, transform_indices = @transform_3, window_bounds = array<i64: 75, 120>}, {pipeline_mode = #tpu.pipeline_mode<synchronous>, transform_indices = @transform_4, window_bounds = array<i64: 1, 120>}, {transform_indices = @transform_5, window_bounds = array<i64: 2, 120>}]} {
    %c0 = arith.constant 0 : index
    %c0_0 = arith.constant 0 : index
    %0 = vector.load %arg1[%c0, %c0_0] : memref<2x75xf32, #tpu.memory_space<vmem>>, vector<2x75xf32>
    %c0_1 = arith.constant 0 : index
    %c0_2 = arith.constant 0 : index
    %1 = vector.load %arg2[%c0_1, %c0_2] : memref<75x75xf32, #tpu.memory_space<vmem>>, vector<75x75xf32>
    %cst = arith.constant dense<0.000000e+00> : vector<2x75xf32>
    %2 = tpu.matmul %0, %1, %cst {dimension_numbers = #tpu.dot_dimension_numbers<[1], [0], [0], [1], [0, 0, 1, 1], [], []>} : vector<2x75xf32>, vector<75x75xf32>, vector<2x75xf32> -> vector<2x75xf32>
    %c0_3 = arith.constant 0 : index
    %c0_4 = arith.constant 0 : index
    %3 = vector.load %arg3[%c0_3, %c0_4] : memref<1x75xf32, #tpu.memory_space<vmem>>, vector<1x75xf32>
    %4 = vector.broadcast %3 : vector<1x75xf32> to vector<2x75xf32>
    %5 = arith.addf %2, %4 : vector<2x75xf32>
    %cst_5 = arith.constant 0.797884583 : f32
    %6 = vector.broadcast %cst_5 : f32 to vector<2x75xf32>
    %7 = arith.mulf %5, %6 : vector<2x75xf32>
    %8 = arith.mulf %5, %5 : vector<2x75xf32>
    %9 = arith.mulf %8, %5 : vector<2x75xf32>
    %cst_6 = arith.constant 0.0356774069 : f32
    %10 = vector.broadcast %cst_6 : f32 to vector<2x75xf32>
    %11 = arith.mulf %9, %10 : vector<2x75xf32>
    %12 = arith.addf %7, %11 : vector<2x75xf32>
    %13 = math.tanh %12 : vector<2x75xf32>
    %cst_7 = arith.constant 5.000000e-01 : f32
    %14 = vector.broadcast %cst_7 : f32 to vector<2x75xf32>
    %15 = arith.mulf %14, %5 : vector<2x75xf32>
    %cst_8 = arith.constant 1.000000e+00 : f32
    %16 = vector.broadcast %cst_8 : f32 to vector<2x75xf32>
    %17 = arith.addf %13, %16 : vector<2x75xf32>
    %18 = arith.mulf %15, %17 : vector<2x75xf32>
    %c0_9 = arith.constant 0 : index
    %c0_10 = arith.constant 0 : index
    %19 = vector.load %arg4[%c0_9, %c0_10] : memref<75x120xf32, #tpu.memory_space<vmem>>, vector<75x120xf32>
    %cst_11 = arith.constant dense<0.000000e+00> : vector<2x120xf32>
    %20 = tpu.matmul %18, %19, %cst_11 {dimension_numbers = #tpu.dot_dimension_numbers<[1], [0], [0], [1], [0, 0, 1, 1], [], []>} : vector<2x75xf32>, vector<75x120xf32>, vector<2x120xf32> -> vector<2x120xf32>
    %c0_12 = arith.constant 0 : index
    %c0_13 = arith.constant 0 : index
    %21 = vector.load %arg5[%c0_12, %c0_13] : memref<1x120xf32, #tpu.memory_space<vmem>>, vector<1x120xf32>
    %22 = vector.broadcast %21 : vector<1x120xf32> to vector<2x120xf32>
    %23 = arith.addf %20, %22 : vector<2x120xf32>
    %c0_14 = arith.constant 0 : index
    %c0_15 = arith.constant 0 : index
    %24 = vector.load %arg6[%c0_14, %c0_15] : memref<2x120xf32, #tpu.memory_space<vmem>>, vector<2x120xf32>
    tpu.vector_store %arg6[%c0_14, %c0_15], %23 {strides = array<i32>} : memref<2x120xf32, #tpu.memory_space<vmem>>, vector<2x120xf32>,
    return
  }
  func.func @transform_0(%arg0: i32) -> (i32, i32) {
    %c0_i32 = arith.constant 0 : i32
    %c0_i32_0 = arith.constant 0 : i32
    return %arg0, %c0_i32 : i32, i32
  }
  func.func @transform_1(%arg0: i32) -> (i32, i32) {
    %c0_i32 = arith.constant 0 : i32
    %c0_i32_0 = arith.constant 0 : i32
    %c0_i32_1 = arith.constant 0 : i32
    return %c0_i32, %c0_i32_0 : i32, i32
  }
  func.func @transform_2(%arg0: i32) -> (i32, i32) {
    %c0_i32 = arith.constant 0 : i32
    %c0_i32_0 = arith.constant 0 : i32
    %c0_i32_1 = arith.constant 0 : i32
    return %c0_i32, %c0_i32_0 : i32, i32
  }
  func.func @transform_3(%arg0: i32) -> (i32, i32) {
    %c0_i32 = arith.constant 0 : i32
    %c0_i32_0 = arith.constant 0 : i32
    %c0_i32_1 = arith.constant 0 : i32
    return %c0_i32, %c0_i32_0 : i32, i32
  }
  func.func @transform_4(%arg0: i32) -> (i32, i32) {
    %c0_i32 = arith.constant 0 : i32
    %c0_i32_0 = arith.constant 0 : i32
    %c0_i32_1 = arith.constant 0 : i32
    return %c0_i32, %c0_i32_0 : i32, i32
  }
  func.func @transform_5(%arg0: i32) -> (i32, i32) {
    %c0_i32 = arith.constant 0 : i32
    %c0_i32_0 = arith.constant 0 : i32
    return %arg0, %c0_i32 : i32, i32
  }
}

</mosaic_0001>

<llo_original>
// kernel: tpu_custom_call.1
$region0: #{tpu_custom_call.1}
  #allocation0 [shape = 'u32[]', space=smem, size = 0x4, offset = 0x4, fixed_abs, tag = 'smem constant byte address 0x4 - core index']
  #allocation1 [shape = 'u32[144,128]{1,0:T(1,128)}', space=vmem, size = 0x12000, scoped, tag = 'internal scratch']
  %s0 = inlined_call_operand.hbm [shape: f32[2,75], index: 0, kind: input, shape index: {}]
  %s1 = inlined_call_operand.hbm [shape: f32[75,75], index: 1, kind: input, shape index: {}]
  %s2 = inlined_call_operand.vmem [shape: f32[1,75], index: 2, kind: input, shape index: {}]
  %s3 = inlined_call_operand.hbm [shape: f32[75,120], index: 3, kind: input, shape index: {}]
  %s4 = inlined_call_operand.vmem [shape: f32[1,120], index: 4, kind: input, shape index: {}]
  %s5 = inlined_call_operand.hbm [shape: f32[2,120], index: 5, kind: output, shape index: {}]
  %s6 = sld [smem:[#allocation0]]
  $region42: #{tpu_custom_call.1} parent=0
    _
  %s8 = ssub.s32 1, %s6
  %s9 = scalar_select 0, %s8, %s6
  $region1: #{tpu_custom_call.1} parent=0
    #allocation2 [shape = 'u8[1024]{0}', space=vmem, size = 0x400, scoped, tag = 'input window, operand 0, single buffered']
    #allocation3 [shape = 's32[1]{0}', space=sflag, size = 0x4, scoped, tag = 'scoped memory for tpu_custom_call.1']
    #allocation4 [shape = 's32[1]{0}', space=sflag, size = 0x4, scoped, tag = 'scoped memory for tpu_custom_call.1']
    #allocation5 [shape = 'u8[40960]{0}', space=vmem, size = 0xa000, scoped, tag = 'input window, operand 1, single buffered']
    #allocation6 [shape = 's32[1]{0}', space=sflag, size = 0x4, scoped, tag = 'scoped memory for tpu_custom_call.1']
    #allocation7 [shape = 'u8[40960]{0}', space=vmem, size = 0xa000, scoped, tag = 'input window, operand 3, single buffered']
    #allocation8 [shape = 'u8[1024]{0}', space=vmem, size = 0x400, scoped, tag = 'output window, operand 0, single buffered']
    %10 = vsyncpa [#allocation3], 0
    %11 = vsyncpa [#allocation6], 0
    %12 = vsyncpa [#allocation4], 0
    // Predicated region
    $region2: #{tpu_custom_call.1} parent=1 // pred_check
      _
    $region3: #{tpu_custom_call.1} parent=1 // pred_check_branch
      %14 = sbr.rel (0) target = $region5
    $region4: #{tpu_custom_call.1} parent=1 // pred_region
      %s16 = ssub.s32 32, 32
      %17 = vsyncadd [#allocation3], %s16
      %s19 = sshll.u32 [#allocation2], 4
      %s20 = int_to_ptr.vmem [resolvable:$true] %s19
      %22 = dma.hbm_to_vmem [thread:$0]  %s0, 32, %s20, [#allocation3]
    $region5: #{tpu_custom_call.1} parent=1 // pred_fallthru
      _
    // Predicated region
    $region6: #{tpu_custom_call.1} parent=1 // pred_check
      _
    $region7: #{tpu_custom_call.1} parent=1 // pred_check_branch
      %24 = sbr.rel (0) target = $region9
    $region8: #{tpu_custom_call.1} parent=1 // pred_region
      %s26 = ssub.s32 1280, 1280
      %27 = vsyncadd [#allocation6], %s26
      %s28 = sshll.u32 [#allocation5], 4
      %s29 = int_to_ptr.vmem [resolvable:$true] %s28
      %34 = dma.hbm_to_vmem [thread:$0]  %s1, 1280, %s29, [#allocation6], 128, 128, 8
    $region9: #{tpu_custom_call.1} parent=1 // pred_fallthru
      _
    // Predicated region
    $region10: #{tpu_custom_call.1} parent=1 // pred_check
      _
    $region11: #{tpu_custom_call.1} parent=1 // pred_check_branch
      %36 = sbr.rel (0) target = $region13
    $region12: #{tpu_custom_call.1} parent=1 // pred_region
      _
    $region13: #{tpu_custom_call.1} parent=1 // pred_fallthru
      _
    // Predicated region
    $region14: #{tpu_custom_call.1} parent=1 // pred_check
      _
    $region15: #{tpu_custom_call.1} parent=1 // pred_check_branch
      %38 = sbr.rel (0) target = $region17
    $region16: #{tpu_custom_call.1} parent=1 // pred_region
      %s40 = ssub.s32 1280, 1280
      %41 = vsyncadd [#allocation6], %s40
      %s42 = sshll.u32 [#allocation7], 4
      %s43 = int_to_ptr.vmem [resolvable:$true] %s42
      %48 = dma.hbm_to_vmem [thread:$0]  %s3, 1280, %s43, [#allocation6], 128, 128, 8
    $region17: #{tpu_custom_call.1} parent=1 // pred_fallthru
      _
    // Predicated region
    $region18: #{tpu_custom_call.1} parent=1 // pred_check
      _
    $region19: #{tpu_custom_call.1} parent=1 // pred_check_branch
      %50 = sbr.rel (0) target = $region21
    $region20: #{tpu_custom_call.1} parent=1 // pred_region
      _
    $region21: #{tpu_custom_call.1} parent=1 // pred_fallthru
      _
    // Predicated region
    $region22: #{tpu_custom_call.1} parent=1 // pred_check
      _
    $region23: #{tpu_custom_call.1} parent=1 // pred_check_branch
      %52 = sbr.rel (0) target = $region25
    $region24: #{tpu_custom_call.1} parent=1 // pred_region
      %53 = dma.done [#allocation3], 32
    $region25: #{tpu_custom_call.1} parent=1 // pred_fallthru
      _
    // Predicated region
    $region26: #{tpu_custom_call.1} parent=1 // pred_check
      _
    $region27: #{tpu_custom_call.1} parent=1 // pred_check_branch
      %55 = sbr.rel (0) target = $region29
    $region28: #{tpu_custom_call.1} parent=1 // pred_region
      %56 = dma.done [#allocation6], 1280
    $region29: #{tpu_custom_call.1} parent=1 // pred_fallthru
      _
    // Predicated region
    $region30: #{tpu_custom_call.1} parent=1 // pred_check
      _
    $region31: #{tpu_custom_call.1} parent=1 // pred_check_branch
      %58 = sbr.rel (0) target = $region33
    $region32: #{tpu_custom_call.1} parent=1 // pred_region
      %59 = dma.done [#allocation6], 1280
    $region33: #{tpu_custom_call.1} parent=1 // pred_fallthru
      _
    %v60 = vld [vmem:[#allocation2] sm:$0x3]
    %v61 = vld [vmem:[#allocation5] sm:$0xff]
    %v62 = vld [vmem:[#allocation5 + $0x8] sm:$0xff]
    %v63 = vld [vmem:[#allocation5 + $0x10] sm:$0xff]
    %v64 = vld [vmem:[#allocation5 + $0x18] sm:$0xff]
    %v65 = vld [vmem:[#allocation5 + $0x20] sm:$0xff]
    %v66 = vld [vmem:[#allocation5 + $0x28] sm:$0xff]
    %v67 = vld [vmem:[#allocation5 + $0x30] sm:$0xff]
    %v68 = vld [vmem:[#allocation5 + $0x38] sm:$0xff]
    %v69 = vld [vmem:[#allocation5 + $0x40] sm:$0xff]
    %v70 = vld [vmem:[#allocation5 + $0x48] sm:$0x7]
    %v71 = vld [vmem:[%s2] sm:$0x1]
    %v73 = vlaneseq
    %v74 = vshrl.u32 %v73, 7
    %v75 = vsub.s32 0, %v74
    %v76 = vrot.slane %v71, %v75
    %vm78 = vcmask 613376
    %v80 = vsel %vm78, %v60, 0
    %vm82 = vcmask 1042432
    %v84 = vsel %vm82, %v70, 0
    %86 = vmatprep.subr.mxu0 0.0
    %87 = vmatpush1.msra.mxu0 0.0
    %88 = vmatprep.subr.mxu0 0.0
    %89 = vmatpush1.msra.mxu0 0.0
    %90 = vmatprep.subr.mxu0 0.0
    %91 = vmatpush1.msra.mxu0 0.0
    %92 = vmatprep.subr.mxu0 0.0
    %93 = vmatpush1.msra.mxu0 0.0
    %94 = vmatprep.subr.mxu0 0.0
    %95 = vmatpush1.msra.mxu0 0.0
    %96 = vmatprep.subr.mxu0 0.0
    %97 = vmatpush1.msra.mxu0 0.0
    %98 = vmatprep.subr.mxu0 0.0
    %99 = vmatpush1.msra.mxu0 %v84
    %100 = vmatprep.subr.mxu0 0.0
    %101 = vmatpush1.msra.mxu0 %v69
    %102 = vmatprep.subr.mxu0 0.0
    %103 = vmatpush1.msra.mxu0 %v68
    %104 = vmatprep.subr.mxu0 0.0
    %105 = vmatpush1.msra.mxu0 %v67
    %106 = vmatprep.subr.mxu0 0.0
    %107 = vmatpush1.msra.mxu0 %v66
    %108 = vmatprep.subr.mxu0 0.0
    %109 = vmatpush1.msra.mxu0 %v65
    %110 = vmatprep.subr.mxu0 0.0
    %111 = vmatpush1.msra.mxu0 %v64
    %112 = vmatprep.subr.mxu0 0.0
    %113 = vmatpush1.msra.mxu0 %v63
    %114 = vmatprep.subr.mxu0 0.0
    %115 = vmatpush1.msra.mxu0 %v62
    %116 = vmatprep.subr.mxu0 0.0
    %117 = vmatpush1.msra.mxu0 %v61
    %118 = vmatprep.subr.mxu0 0.0
    %119 = vmatpush2.msra.mxu0 0.0
    %120 = vmatprep.subr.mxu0 0.0
    %121 = vmatpush2.msra.mxu0 0.0
    %122 = vmatprep.subr.mxu0 0.0
    %123 = vmatpush2.msra.mxu0 0.0
    %124 = vmatprep.subr.mxu0 0.0
    %125 = vmatpush2.msra.mxu0 0.0
    %126 = vmatprep.subr.mxu0 0.0
    %127 = vmatpush2.msra.mxu0 0.0
    %128 = vmatprep.subr.mxu0 0.0
    %129 = vmatpush2.msra.mxu0 0.0
    %130 = vmatprep.subr.mxu0 0.0
    %131 = vmatpush2.msra.mxu0 0.0
    %132 = vmatprep.subr.mxu0 0.0
    %133 = vmatpush2.msra.mxu0 0.0
    %134 = vmatprep.subr.mxu0 0.0
    %135 = vmatpush2.msra.mxu0 0.0
    %136 = vmatprep.subr.mxu0 0.0
    %137 = vmatpush2.msra.mxu0 0.0
    %138 = vmatprep.subr.mxu0 0.0
    %139 = vmatpush2.msra.mxu0 0.0
    %140 = vmatprep.subr.mxu0 0.0
    %141 = vmatpush2.msra.mxu0 0.0
    %142 = vmatprep.subr.mxu0 0.0
    %143 = vmatpush2.msra.mxu0 0.0
    %144 = vmatprep.subr.mxu0 0.0
    %145 = vmatpush2.msra.mxu0 0.0
    %146 = vmatprep.subr.mxu0 0.0
    %147 = vmatpush2.msra.mxu0 0.0
    %148 = vmatprep.subr.mxu0 0.0
    %149 = vmatpush2.msra.mxu0 0.0
    %150 = vmatprep.mubr.f32.mxu0 0.0
    %151 = vmatmul.mubr.f32.gmra.mxu0 %v80
    %v152 = vpop.f32.mrf.mxu0
    %v153 = vadd.f32 %v76, %v152
    %v154 = vpop.f32.mrf.mxu0
    %155 = vdwg.mxu0
    %v156 = vmul.f32 %v153, 0.7978846
    %v157 = vmul.f32 %v153, %v153
    %v158 = vmul.f32 %v157, %v153
    %v159 = vmul.f32 %v158, 0.035677407
    %v160 = vadd.f32 %v156, %v159
    %v161 = vtanh.pop %v160
    %v162 = vmul.f32 %v153, 0.5
    %v163 = vadd.f32 %v161, 1.0
    %v164 = vmul.f32 %v162, %v163
    %v165 = vld [vmem:[#allocation7] sm:$0xff]
    %v166 = vld [vmem:[#allocation7 + $0x8] sm:$0xff]
    %v167 = vld [vmem:[#allocation7 + $0x10] sm:$0xff]
    %v168 = vld [vmem:[#allocation7 + $0x18] sm:$0xff]
    %v169 = vld [vmem:[#allocation7 + $0x20] sm:$0xff]
    %v170 = vld [vmem:[#allocation7 + $0x28] sm:$0xff]
    %v171 = vld [vmem:[#allocation7 + $0x30] sm:$0xff]
    %v172 = vld [vmem:[#allocation7 + $0x38] sm:$0xff]
    %v173 = vld [vmem:[#allocation7 + $0x40] sm:$0xff]
    %v174 = vld [vmem:[#allocation7 + $0x48] sm:$0x7]
    %v175 = vld [vmem:[%s4] sm:$0x1]
    %v177 = vlaneseq
    %v178 = vshrl.u32 %v177, 7
    %v179 = vsub.s32 0, %v178
    %v180 = vrot.slane %v175, %v179
    %v183 = vsel %vm78, %v164, 0
    %v186 = vsel %vm82, %v174, 0
    %188 = vmatprep.subr.mxu0 0.0
    %189 = vmatpush1.msra.mxu0 0.0
    %190 = vmatprep.subr.mxu0 0.0
    %191 = vmatpush1.msra.mxu0 0.0
    %192 = vmatprep.subr.mxu0 0.0
    %193 = vmatpush1.msra.mxu0 0.0
    %194 = vmatprep.subr.mxu0 0.0
    %195 = vmatpush1.msra.mxu0 0.0
    %196 = vmatprep.subr.mxu0 0.0
    %197 = vmatpush1.msra.mxu0 0.0
    %198 = vmatprep.subr.mxu0 0.0
    %199 = vmatpush1.msra.mxu0 0.0
    %200 = vmatprep.subr.mxu0 0.0
    %201 = vmatpush1.msra.mxu0 %v186
    %202 = vmatprep.subr.mxu0 0.0
    %203 = vmatpush1.msra.mxu0 %v173
    %204 = vmatprep.subr.mxu0 0.0
    %205 = vmatpush1.msra.mxu0 %v172
    %206 = vmatprep.subr.mxu0 0.0
    %207 = vmatpush1.msra.mxu0 %v171
    %208 = vmatprep.subr.mxu0 0.0
    %209 = vmatpush1.msra.mxu0 %v170
    %210 = vmatprep.subr.mxu0 0.0
    %211 = vmatpush1.msra.mxu0 %v169
    %212 = vmatprep.subr.mxu0 0.0
    %213 = vmatpush1.msra.mxu0 %v168
    %214 = vmatprep.subr.mxu0 0.0
    %215 = vmatpush1.msra.mxu0 %v167
    %216 = vmatprep.subr.mxu0 0.0
    %217 = vmatpush1.msra.mxu0 %v166
    %218 = vmatprep.subr.mxu0 0.0
    %219 = vmatpush1.msra.mxu0 %v165
    %220 = vmatprep.subr.mxu0 0.0
    %221 = vmatpush2.msra.mxu0 0.0
    %222 = vmatprep.subr.mxu0 0.0
    %223 = vmatpush2.msra.mxu0 0.0
    %224 = vmatprep.subr.mxu0 0.0
    %225 = vmatpush2.msra.mxu0 0.0
    %226 = vmatprep.subr.mxu0 0.0
    %227 = vmatpush2.msra.mxu0 0.0
    %228 = vmatprep.subr.mxu0 0.0
    %229 = vmatpush2.msra.mxu0 0.0
    %230 = vmatprep.subr.mxu0 0.0
    %231 = vmatpush2.msra.mxu0 0.0
    %232 = vmatprep.subr.mxu0 0.0
    %233 = vmatpush2.msra.mxu0 0.0
    %234 = vmatprep.subr.mxu0 0.0
    %235 = vmatpush2.msra.mxu0 0.0
    %236 = vmatprep.subr.mxu0 0.0
    %237 = vmatpush2.msra.mxu0 0.0
    %238 = vmatprep.subr.mxu0 0.0
    %239 = vmatpush2.msra.mxu0 0.0
    %240 = vmatprep.subr.mxu0 0.0
    %241 = vmatpush2.msra.mxu0 0.0
    %242 = vmatprep.subr.mxu0 0.0
    %243 = vmatpush2.msra.mxu0 0.0
    %244 = vmatprep.subr.mxu0 0.0
    %245 = vmatpush2.msra.mxu0 0.0
    %246 = vmatprep.subr.mxu0 0.0
    %247 = vmatpush2.msra.mxu0 0.0
    %248 = vmatprep.subr.mxu0 0.0
    %249 = vmatpush2.msra.mxu0 0.0
    %250 = vmatprep.subr.mxu0 0.0
    %251 = vmatpush2.msra.mxu0 0.0
    %252 = vmatprep.mubr.f32.mxu0 0.0
    %253 = vmatmul.mubr.f32.gmra.mxu0 %v183
    %v254 = vpop.f32.mrf.mxu0
    %v255 = vadd.f32 %v180, %v254
    %v256 = vpop.f32.mrf.mxu0
    %257 = vdwg.mxu0
    %vm258 = vcmask 975872
    %259 = vst.msk [vmem:[#allocation8] sm:$0x3] %vm258, %v255
    // Predicated region
    $region34: #{tpu_custom_call.1} parent=1 // pred_check
      _
    $region35: #{tpu_custom_call.1} parent=1 // pred_check_branch
      %261 = sbr.rel (0) target = $region37
    $region36: #{tpu_custom_call.1} parent=1 // pred_region
      %s263 = ssub.s32 32, 32
      %264 = vsyncadd [#allocation4], %s263
      %s266 = sshll.u32 [#allocation8], 4
      %s267 = int_to_ptr.vmem [resolvable:$true] %s266
      %269 = dma.vmem_to_hbm [thread:$0]  %s267, 32, %s5, [#allocation4]
    $region37: #{tpu_custom_call.1} parent=1 // pred_fallthru
      _
    // Predicated region
    $region38: #{tpu_custom_call.1} parent=1 // pred_check
      _
    $region39: #{tpu_custom_call.1} parent=1 // pred_check_branch
      %271 = sbr.rel (0) target = $region41
    $region40: #{tpu_custom_call.1} parent=1 // pred_region
      %272 = dma.done [#allocation4], 32
    $region41: #{tpu_custom_call.1} parent=1 // pred_fallthru
      _
    %273 = vsyncpa [#allocation3], 1
    %274 = vsyncpa [#allocation6], 1
    %275 = vsyncpa [#allocation4], 1

</llo_original>
